<compile_context>
chip_gen: v7x
topology: tpu7x:2x2x1
jax: 0.10.0
libtpu: 0.0.40
codegen_flags: <defaults>
</compile_context>

<pallas_src>
import functools

import jax
import jax.numpy as jnp
from jax.experimental import pallas as pl
from jax.experimental.pallas import tpu as pltpu

LANE = 128  # vreg lane width (last dim)


def _round_up(n, m):
    return ((n + m - 1) // m) * m


# ---------------------------------------------------------------------------
# Fused MLP kernel: x -> [Linear (+ReLU)] * L -> out, all inside one kernel.
# ---------------------------------------------------------------------------
def _fused_mlp_kernel(x_ref, w_ref, b_ref, o_ref, *, num_layers, relu_flags,
                      in_dim, out_dim):
    # x is raw (B, in_dim); padded weight rows beyond in_dim are zero, so using
    # only the first `in_dim` rows of layer 0's weight is exact.
    h = x_ref[...].astype(jnp.float32)
    for i in range(num_layers):
        w = w_ref[i]                   # (dpad, dpad), static leading index
        if i == 0:
            w = w[:in_dim, :]          # static sublane slice to match raw x
        # MXU matmul with f32 accumulation; bias + ReLU epilogue on the VPU.
        h = jnp.dot(h, w, preferred_element_type=jnp.float32) + b_ref[i]
        if relu_flags[i]:
            h = jnp.maximum(h, 0.0)
    # Padded lanes of h are exactly zero; slice in-register and store the raw
    # (B, out_dim) result (single masked vst -- negligible at this size).
    o_ref[...] = h[:, :out_dim].astype(o_ref.dtype)


# ---------------------------------------------------------------------------
# One-time (hoisted) parameter preparation: pad + stack all Linear layers.
# ---------------------------------------------------------------------------
def prepare_params(params):
    """Returns (w_stacked, b_stacked, meta):
      w_stacked: (L, dpad, dpad) f32, zero-padded weights
      b_stacked: (L, 1, dpad)    f32, zero-padded biases
      meta: static kwargs for `fused_mlp_forward` (bake in via functools.partial).
    Run ONCE (e.g. at init); do NOT call inside the per-step forward.
    """
    layers, relu_flags = _collect_layers(params)
    num_layers = len(layers)
    in_dim = layers[0][0].shape[0]
    out_dim = layers[-1][0].shape[1]
    dpad = _round_up(max(max(w.shape) for w, _ in layers), LANE)

    w_stacked = jnp.zeros((num_layers, dpad, dpad), jnp.float32)
    b_stacked = jnp.zeros((num_layers, 1, dpad), jnp.float32)
    for i, (w, b) in enumerate(layers):
        w_stacked = w_stacked.at[i, : w.shape[0], : w.shape[1]].set(w)
        b_stacked = b_stacked.at[i, 0, : b.shape[0]].set(b)

    meta = dict(
        num_layers=num_layers,
        relu_flags=tuple(bool(f) for f in relu_flags),
        in_dim=int(in_dim),
        out_dim=int(out_dim),
    )
    return w_stacked, b_stacked, meta


# ---------------------------------------------------------------------------
# Per-call forward: exactly one pallas_call, no surrounding pad/slice HLO.
# ---------------------------------------------------------------------------
def fused_mlp_forward(w_stacked, b_stacked, x, *, num_layers, relu_flags,
                      in_dim, out_dim):
    B = x.shape[0]
    L, dpad, _ = w_stacked.shape

    # Advisory cost hint so XLA schedules this tiny custom call sensibly.
    cost = pl.CostEstimate(
        flops=2 * B * L * dpad * dpad,
        transcendentals=0,
        bytes_accessed=4 * (x.size + w_stacked.size + b_stacked.size + B * out_dim),
    )

    kernel = functools.partial(
        _fused_mlp_kernel,
        num_layers=num_layers,
        relu_flags=relu_flags,
        in_dim=in_dim,
        out_dim=out_dim,
    )

    vmem = pl.BlockSpec(memory_space=pltpu.MemorySpace.VMEM)
    return pl.pallas_call(
        kernel,
        out_shape=jax.ShapeDtypeStruct((B, out_dim), x.dtype),
        in_specs=[vmem, vmem, vmem],
        out_specs=vmem,
        cost_estimate=cost,
    )(x, w_stacked, b_stacked)


# ---------------------------------------------------------------------------
# Parameter init mirroring Net.__init__ structure.
# ---------------------------------------------------------------------------
def init_net_params(key, input_dim, base_hidden, append_hidden, output_dim):
    params = {"base": [], "append": [], "last": None}
    dims_in = input_dim
    for h in base_hidden:
        key, kw, kb = jax.random.split(key, 3)
        w = jax.random.normal(kw, (dims_in, h), jnp.float32) * (1.0 / jnp.sqrt(dims_in))
        b = jax.random.normal(kb, (h,), jnp.float32) * 0.01
        params["base"].append((w, b))
        dims_in = h
    for h in append_hidden:
        key, kw, kb = jax.random.split(key, 3)
        w = jax.random.normal(kw, (dims_in, h), jnp.float32) * (1.0 / jnp.sqrt(dims_in))
        b = jax.random.normal(kb, (h,), jnp.float32) * 0.01
        params["append"].append((w, b))
        dims_in = h
    # net_last_init_func = uniform_init -> small uniform weights
    key, kw, kb = jax.random.split(key, 3)
    w = jax.random.uniform(kw, (dims_in, output_dim), jnp.float32, -3e-3, 3e-3)
    b = jax.random.uniform(kb, (output_dim,), jnp.float32, -3e-3, 3e-3)
    params["last"] = (w, b)
    return params


def _collect_layers(params):
    layers, relu_flags = [], []
    # base(x): Linear + ReLU per hidden layer (activation_func = F.relu)
    for w, b in params["base"]:
        layers.append((w, b))
        relu_flags.append(True)
    # append_fcs: Linear then activation (add_bn=False, add_ln=False default)
    for w, b in params["append"]:
        layers.append((w, b))
        relu_flags.append(True)
    # last: Linear, no activation
    layers.append(params["last"])
    relu_flags.append(False)
    return layers, relu_flags


if __name__ == "__main__":
    key = jax.random.PRNGKey(0)
    key, kx, kp = jax.random.split(key, 3)

    batch = 2
    input_dim = 16
    base_hidden = [32, 32]      # base MLP hidden shapes
    append_hidden = [32]        # append_hidden_shapes
    output_dim = 4              # output_shape

    x = jax.random.normal(kx, (batch, input_dim), jnp.float32)
    params = init_net_params(kp, input_dim, base_hidden, append_hidden, output_dim)

    # One-time parameter preparation (pad + stack), hoisted out of the forward.
    w_stacked, b_stacked, meta = prepare_params(params)
    w_stacked = jax.block_until_ready(w_stacked)
    b_stacked = jax.block_until_ready(b_stacked)

    fwd = jax.jit(functools.partial(fused_mlp_forward, **meta))
    out = jax.block_until_ready(fwd(w_stacked, b_stacked, x))

    # Reference check in plain JAX to validate fused-kernel semantics.
    ref = x
    for w, b in params["base"]:
        ref = jnp.maximum(ref @ w + b, 0.0)
    for w, b in params["append"]:
        ref = jnp.maximum(ref @ w + b, 0.0)
    w, b = params["last"]
    ref = ref @ w + b

    assert out.shape == (batch, output_dim)
    assert jnp.allclose(out, ref, atol=1e-5), "mismatch vs reference"

    print("KERNEL_OK")
</pallas_src>

<mosaic_0001>
module attributes {stable_mosaic.version = 11 : i64} {
  func.func @_fused_mlp_kernel(%arg0: memref<2x16xf32, #tpu.memory_space<vmem>>, %arg1: memref<4x128x128xf32, #tpu.memory_space<vmem>>, %arg2: memref<4x1x128xf32, #tpu.memory_space<vmem>>, %arg3: memref<2x4xf32, #tpu.memory_space<vmem>>) attributes {dimension_semantics = [], scalar_prefetch = 0 : i64, scratch_operands = 0 : i64, tpu.core_type = #tpu.core_type<tc>} {
    %c0 = arith.constant 0 : index
    %c0_0 = arith.constant 0 : index
    %0 = vector.load %arg0[%c0, %c0_0] : memref<2x16xf32, #tpu.memory_space<vmem>>, vector<2x16xf32>
    %c0_1 = arith.constant 0 : index
    %c0_2 = arith.constant 0 : index
    %c0_3 = arith.constant 0 : index
    %1 = vector.load %arg1[%c0_1, %c0_2, %c0_3] : memref<4x128x128xf32, #tpu.memory_space<vmem>>, vector<1x128x128xf32>
    %2 = vector.shape_cast %1 : vector<1x128x128xf32> to vector<128x128xf32>
    %3 = vector.extract_strided_slice %2 {offsets = [0, 0], sizes = [16, 128], strides = [1, 1]} : vector<128x128xf32> to vector<16x128xf32>
    %cst = arith.constant dense<0.000000e+00> : vector<2x128xf32>
    %4 = tpu.matmul %0, %3, %cst {dimension_numbers = #tpu.dot_dimension_numbers<[1], [0], [0], [1], [0, 0, 1, 1], [], []>} : vector<2x16xf32>, vector<16x128xf32>, vector<2x128xf32> -> vector<2x128xf32>
    %c0_4 = arith.constant 0 : index
    %c0_5 = arith.constant 0 : index
    %c0_6 = arith.constant 0 : index
    %5 = vector.load %arg2[%c0_4, %c0_5, %c0_6] : memref<4x1x128xf32, #tpu.memory_space<vmem>>, vector<1x1x128xf32>
    %6 = vector.shape_cast %5 : vector<1x1x128xf32> to vector<1x128xf32>
    %7 = vector.broadcast %6 : vector<1x128xf32> to vector<2x128xf32>
    %8 = arith.addf %4, %7 : vector<2x128xf32>
    %cst_7 = arith.constant 0.000000e+00 : f32
    %9 = vector.broadcast %cst_7 : f32 to vector<2x128xf32>
    %10 = arith.maximumf %8, %9 : vector<2x128xf32>
    %c1 = arith.constant 1 : index
    %c0_8 = arith.constant 0 : index
    %c0_9 = arith.constant 0 : index
    %11 = vector.load %arg1[%c1, %c0_8, %c0_9] : memref<4x128x128xf32, #tpu.memory_space<vmem>>, vector<1x128x128xf32>
    %12 = vector.shape_cast %11 : vector<1x128x128xf32> to vector<128x128xf32>
    %cst_10 = arith.constant dense<0.000000e+00> : vector<2x128xf32>
    %13 = tpu.matmul %10, %12, %cst_10 {dimension_numbers = #tpu.dot_dimension_numbers<[1], [0], [0], [1], [0, 0, 1, 1], [], []>} : vector<2x128xf32>, vector<128x128xf32>, vector<2x128xf32> -> vector<2x128xf32>
    %c1_11 = arith.constant 1 : index
    %c0_12 = arith.constant 0 : index
    %c0_13 = arith.constant 0 : index
    %14 = vector.load %arg2[%c1_11, %c0_12, %c0_13] : memref<4x1x128xf32, #tpu.memory_space<vmem>>, vector<1x1x128xf32>
    %15 = vector.shape_cast %14 : vector<1x1x128xf32> to vector<1x128xf32>
    %16 = vector.broadcast %15 : vector<1x128xf32> to vector<2x128xf32>
    %17 = arith.addf %13, %16 : vector<2x128xf32>
    %cst_14 = arith.constant 0.000000e+00 : f32
    %18 = vector.broadcast %cst_14 : f32 to vector<2x128xf32>
    %19 = arith.maximumf %17, %18 : vector<2x128xf32>
    %c2 = arith.constant 2 : index
    %c0_15 = arith.constant 0 : index
    %c0_16 = arith.constant 0 : index
    %20 = vector.load %arg1[%c2, %c0_15, %c0_16] : memref<4x128x128xf32, #tpu.memory_space<vmem>>, vector<1x128x128xf32>
    %21 = vector.shape_cast %20 : vector<1x128x128xf32> to vector<128x128xf32>
    %cst_17 = arith.constant dense<0.000000e+00> : vector<2x128xf32>
    %22 = tpu.matmul %19, %21, %cst_17 {dimension_numbers = #tpu.dot_dimension_numbers<[1], [0], [0], [1], [0, 0, 1, 1], [], []>} : vector<2x128xf32>, vector<128x128xf32>, vector<2x128xf32> -> vector<2x128xf32>
    %c2_18 = arith.constant 2 : index
    %c0_19 = arith.constant 0 : index
    %c0_20 = arith.constant 0 : index
    %23 = vector.load %arg2[%c2_18, %c0_19, %c0_20] : memref<4x1x128xf32, #tpu.memory_space<vmem>>, vector<1x1x128xf32>
    %24 = vector.shape_cast %23 : vector<1x1x128xf32> to vector<1x128xf32>
    %25 = vector.broadcast %24 : vector<1x128xf32> to vector<2x128xf32>
    %26 = arith.addf %22, %25 : vector<2x128xf32>
    %cst_21 = arith.constant 0.000000e+00 : f32
    %27 = vector.broadcast %cst_21 : f32 to vector<2x128xf32>
    %28 = arith.maximumf %26, %27 : vector<2x128xf32>
    %c3 = arith.constant 3 : index
    %c0_22 = arith.constant 0 : index
    %c0_23 = arith.constant 0 : index
    %29 = vector.load %arg1[%c3, %c0_22, %c0_23] : memref<4x128x128xf32, #tpu.memory_space<vmem>>, vector<1x128x128xf32>
    %30 = vector.shape_cast %29 : vector<1x128x128xf32> to vector<128x128xf32>
    %cst_24 = arith.constant dense<0.000000e+00> : vector<2x128xf32>
    %31 = tpu.matmul %28, %30, %cst_24 {dimension_numbers = #tpu.dot_dimension_numbers<[1], [0], [0], [1], [0, 0, 1, 1], [], []>} : vector<2x128xf32>, vector<128x128xf32>, vector<2x128xf32> -> vector<2x128xf32>
    %c3_25 = arith.constant 3 : index
    %c0_26 = arith.constant 0 : index
    %c0_27 = arith.constant 0 : index
    %32 = vector.load %arg2[%c3_25, %c0_26, %c0_27] : memref<4x1x128xf32, #tpu.memory_space<vmem>>, vector<1x1x128xf32>
    %33 = vector.shape_cast %32 : vector<1x1x128xf32> to vector<1x128xf32>
    %34 = vector.broadcast %33 : vector<1x128xf32> to vector<2x128xf32>
    %35 = arith.addf %31, %34 : vector<2x128xf32>
    %36 = vector.extract_strided_slice %35 {offsets = [0, 0], sizes = [2, 4], strides = [1, 1]} : vector<2x128xf32> to vector<2x4xf32>
    %c0_28 = arith.constant 0 : index
    %c0_29 = arith.constant 0 : index
    %37 = vector.load %arg3[%c0_28, %c0_29] : memref<2x4xf32, #tpu.memory_space<vmem>>, vector<2x4xf32>
    tpu.vector_store %arg3[%c0_28, %c0_29], %36 {strides = array<i32>} : memref<2x4xf32, #tpu.memory_space<vmem>>, vector<2x4xf32>,
    return
  }
}

</mosaic_0001>

<llo_original>
// kernel: fused_mlp_forward.1
$region0: #{fused_mlp_forward.1}
  #allocation0 [shape = 'u32[]', space=smem, size = 0x4, offset = 0x4, fixed_abs, tag = 'smem constant byte address 0x4 - core index']
  #allocation1 [shape = 'u32[144,128]{1,0:T(1,128)}', space=vmem, size = 0x12000, scoped, tag = 'internal scratch']
  %s0 = inlined_call_operand.vmem [shape: f32[2,16], index: 0, kind: input, shape index: {}]
  %s1 = inlined_call_operand.hbm [shape: f32[4,128,128], index: 1, kind: input, shape index: {}]
  %s2 = inlined_call_operand.hbm [shape: f32[4,1,128], index: 2, kind: input, shape index: {}]
  %s3 = inlined_call_operand.hbm [shape: f32[2,4], index: 3, kind: output, shape index: {}]
  %s4 = sld [smem:[#allocation0]]
  $region30: #{fused_mlp_forward.1} parent=0
    _
  %s6 = ssub.s32 1, %s4
  %s7 = scalar_select 0, %s6, %s4
  $region1: #{fused_mlp_forward.1} parent=0
    #allocation2 [shape = 'u8[262144]{0}', space=vmem, size = 0x40000, scoped, tag = 'input window, operand 1, single buffered']
    #allocation3 [shape = 's32[1]{0}', space=sflag, size = 0x4, scoped, tag = 'scoped memory for fused_mlp_forward.1']
    #allocation4 [shape = 's32[1]{0}', space=sflag, size = 0x4, scoped, tag = 'scoped memory for fused_mlp_forward.1']
    #allocation5 [shape = 'u8[2048]{0}', space=vmem, size = 0x800, scoped, tag = 'input window, operand 2, single buffered']
    #allocation6 [shape = 's32[1]{0}', space=sflag, size = 0x4, scoped, tag = 'scoped memory for fused_mlp_forward.1']
    #allocation7 [shape = 'u8[1024]{0}', space=vmem, size = 0x400, scoped, tag = 'output window, operand 0, single buffered']
    %8 = vsyncpa [#allocation3], 0
    %9 = vsyncpa [#allocation6], 0
    %10 = vsyncpa [#allocation4], 0
    // Predicated region
    $region2: #{fused_mlp_forward.1} parent=1 // pred_check
      _
    $region3: #{fused_mlp_forward.1} parent=1 // pred_check_branch
      %12 = sbr.rel (0) target = $region5
    $region4: #{fused_mlp_forward.1} parent=1 // pred_region
      _
    $region5: #{fused_mlp_forward.1} parent=1 // pred_fallthru
      _
    // Predicated region
    $region6: #{fused_mlp_forward.1} parent=1 // pred_check
      _
    $region7: #{fused_mlp_forward.1} parent=1 // pred_check_branch
      %14 = sbr.rel (0) target = $region9
    $region8: #{fused_mlp_forward.1} parent=1 // pred_region
      %s16 = ssub.s32 8192, 8192
      %17 = vsyncadd [#allocation3], %s16
      %s18 = sshll.u32 [#allocation2], 4
      %s19 = int_to_ptr.vmem [resolvable:$true] %s18
      %24 = dma.hbm_to_vmem [thread:$0]  %s1, 8192, %s19, [#allocation3], 128, 128, 8
    $region9: #{fused_mlp_forward.1} parent=1 // pred_fallthru
      _
    // Predicated region
    $region10: #{fused_mlp_forward.1} parent=1 // pred_check
      _
    $region11: #{fused_mlp_forward.1} parent=1 // pred_check_branch
      %26 = sbr.rel (0) target = $region13
    $region12: #{fused_mlp_forward.1} parent=1 // pred_region
      %s28 = ssub.s32 64, 64
      %29 = vsyncadd [#allocation6], %s28
      %s30 = sshll.u32 [#allocation5], 4
      %s31 = int_to_ptr.vmem [resolvable:$true] %s30
      %36 = dma.hbm_to_vmem [thread:$0]  %s2, 64, %s31, [#allocation6], 16, 16, 1
    $region13: #{fused_mlp_forward.1} parent=1 // pred_fallthru
      _
    // Predicated region
    $region14: #{fused_mlp_forward.1} parent=1 // pred_check
      _
    $region15: #{fused_mlp_forward.1} parent=1 // pred_check_branch
      %38 = sbr.rel (0) target = $region17
    $region16: #{fused_mlp_forward.1} parent=1 // pred_region
      %39 = dma.done [#allocation3], 8192
    $region17: #{fused_mlp_forward.1} parent=1 // pred_fallthru
      _
    // Predicated region
    $region18: #{fused_mlp_forward.1} parent=1 // pred_check
      _
    $region19: #{fused_mlp_forward.1} parent=1 // pred_check_branch
      %41 = sbr.rel (0) target = $region21
    $region20: #{fused_mlp_forward.1} parent=1 // pred_region
      %42 = dma.done [#allocation6], 64
    $region21: #{fused_mlp_forward.1} parent=1 // pred_fallthru
      _
    %v43 = vld [vmem:[%s0] sm:$0x3]
    %v44 = vld [vmem:[#allocation2] sm:$0xff]
    %v45 = vld [vmem:[#allocation2 + $0x8] sm:$0xff]
    %v46 = vld [vmem:[#allocation5] sm:$0x1]
    %v48 = vlaneseq
    %v49 = vshrl.u32 %v48, 7
    %v50 = vsub.s32 0, %v49
    %v51 = vrot.slane %v46, %v50
    %vm53 = vcmask 130048
    %v55 = vsel %vm53, %v43, 0
    %57 = vmatprep.subr.mxu0 0.0
    %58 = vmatpush1.msra.mxu0 %v44
    %59 = vmatprep.subr.mxu0 0.0
    %60 = vmatpush1.msra.mxu0 %v45
    %61 = vmatprep.subr.mxu0 0.0
    %62 = vmatpush1.msra.mxu0 0.0
    %63 = vmatprep.subr.mxu0 0.0
    %64 = vmatpush1.msra.mxu0 0.0
    %65 = vmatprep.subr.mxu0 0.0
    %66 = vmatpush1.msra.mxu0 0.0
    %67 = vmatprep.subr.mxu0 0.0
    %68 = vmatpush1.msra.mxu0 0.0
    %69 = vmatprep.subr.mxu0 0.0
    %70 = vmatpush1.msra.mxu0 0.0
    %71 = vmatprep.subr.mxu0 0.0
    %72 = vmatpush1.msra.mxu0 0.0
    %73 = vmatprep.subr.mxu0 0.0
    %74 = vmatpush1.msra.mxu0 0.0
    %75 = vmatprep.subr.mxu0 0.0
    %76 = vmatpush1.msra.mxu0 0.0
    %77 = vmatprep.subr.mxu0 0.0
    %78 = vmatpush1.msra.mxu0 0.0
    %79 = vmatprep.subr.mxu0 0.0
    %80 = vmatpush1.msra.mxu0 0.0
    %81 = vmatprep.subr.mxu0 0.0
    %82 = vmatpush1.msra.mxu0 0.0
    %83 = vmatprep.subr.mxu0 0.0
    %84 = vmatpush1.msra.mxu0 0.0
    %85 = vmatprep.subr.mxu0 0.0
    %86 = vmatpush1.msra.mxu0 0.0
    %87 = vmatprep.subr.mxu0 0.0
    %88 = vmatpush1.msra.mxu0 0.0
    %89 = vmatprep.subr.mxu0 0.0
    %90 = vmatpush1.msra.mxu0 0.0
    %91 = vmatprep.subr.mxu0 0.0
    %92 = vmatpush1.msra.mxu0 0.0
    %93 = vmatprep.subr.mxu0 0.0
    %94 = vmatpush1.msra.mxu0 0.0
    %95 = vmatprep.subr.mxu0 0.0
    %96 = vmatpush1.msra.mxu0 0.0
    %97 = vmatprep.subr.mxu0 0.0
    %98 = vmatpush1.msra.mxu0 0.0
    %99 = vmatprep.subr.mxu0 0.0
    %100 = vmatpush1.msra.mxu0 0.0
    %101 = vmatprep.subr.mxu0 0.0
    %102 = vmatpush1.msra.mxu0 0.0
    %103 = vmatprep.subr.mxu0 0.0
    %104 = vmatpush1.msra.mxu0 0.0
    %105 = vmatprep.subr.mxu0 0.0
    %106 = vmatpush1.msra.mxu0 0.0
    %107 = vmatprep.subr.mxu0 0.0
    %108 = vmatpush1.msra.mxu0 0.0
    %109 = vmatprep.subr.mxu0 0.0
    %110 = vmatpush1.msra.mxu0 0.0
    %111 = vmatprep.subr.mxu0 0.0
    %112 = vmatpush1.msra.mxu0 0.0
    %113 = vmatprep.subr.mxu0 0.0
    %114 = vmatpush1.msra.mxu0 0.0
    %115 = vmatprep.subr.mxu0 0.0
    %116 = vmatpush1.msra.mxu0 0.0
    %117 = vmatprep.subr.mxu0 0.0
    %118 = vmatpush1.msra.mxu0 0.0
    %119 = vmatprep.subr.mxu0 0.0
    %120 = vmatpush1.msra.mxu0 0.0
    %121 = vmatprep.mubr.f32.mxu0 0.0
    %122 = vmatmul.mubr.f32.gmra.mrb[0].mxu0 %v55
    %v123 = vpop.f32.mrb[0].mxu0
    %v124 = vadd.f32 %v51, %v123
    %v125 = vpop.f32.mrb[0].mxu0
    %126 = vdwg.mxu0
    %v127 = vmax.f32 %v124, 0.0
    %s128 = scalar_lea.vmem [#allocation2], 128
    %v129 = vld [vmem:[%s128] sm:$0xff]
    %v130 = vld [vmem:[%s128 + $0x8] sm:$0xff]
    %v131 = vld [vmem:[%s128 + $0x10] sm:$0xff]
    %v132 = vld [vmem:[%s128 + $0x18] sm:$0xff]
    %v133 = vld [vmem:[%s128 + $0x20] sm:$0xff]
    %v134 = vld [vmem:[%s128 + $0x28] sm:$0xff]
    %v135 = vld [vmem:[%s128 + $0x30] sm:$0xff]
    %v136 = vld [vmem:[%s128 + $0x38] sm:$0xff]
    %v137 = vld [vmem:[%s128 + $0x40] sm:$0xff]
    %v138 = vld [vmem:[%s128 + $0x48] sm:$0xff]
    %v139 = vld [vmem:[%s128 + $0x50] sm:$0xff]
    %v140 = vld [vmem:[%s128 + $0x58] sm:$0xff]
    %v141 = vld [vmem:[%s128 + $0x60] sm:$0xff]
    %v142 = vld [vmem:[%s128 + $0x68] sm:$0xff]
    %v143 = vld [vmem:[%s128 + $0x70] sm:$0xff]
    %v144 = vld [vmem:[%s128 + $0x78] sm:$0xff]
    %s145 = scalar_lea.vmem [#allocation5], 1
    %v146 = vld [vmem:[%s145] sm:$0x1]
    %v148 = vlaneseq
    %v149 = vshrl.u32 %v148, 7
    %v150 = vsub.s32 0, %v149
    %v151 = vrot.slane %v146, %v150
    %153 = vmatprep.subr.mxu0 0.0
    %154 = vmatpush1.msra.mxu0 %v129
    %155 = vmatprep.subr.mxu0 0.0
    %156 = vmatpush1.msra.mxu0 %v130
    %157 = vmatprep.subr.mxu0 0.0
    %158 = vmatpush1.msra.mxu0 %v131
    %159 = vmatprep.subr.mxu0 0.0
    %160 = vmatpush1.msra.mxu0 %v132
    %161 = vmatprep.subr.mxu0 0.0
    %162 = vmatpush1.msra.mxu0 %v133
    %163 = vmatprep.subr.mxu0 0.0
    %164 = vmatpush1.msra.mxu0 %v134
    %165 = vmatprep.subr.mxu0 0.0
    %166 = vmatpush1.msra.mxu0 %v135
    %167 = vmatprep.subr.mxu0 0.0
    %168 = vmatpush1.msra.mxu0 %v136
    %169 = vmatprep.subr.mxu0 0.0
    %170 = vmatpush1.msra.mxu0 %v137
    %171 = vmatprep.subr.mxu0 0.0
    %172 = vmatpush1.msra.mxu0 %v138
    %173 = vmatprep.subr.mxu0 0.0
    %174 = vmatpush1.msra.mxu0 %v139
    %175 = vmatprep.subr.mxu0 0.0
    %176 = vmatpush1.msra.mxu0 %v140
    %177 = vmatprep.subr.mxu0 0.0
    %178 = vmatpush1.msra.mxu0 %v141
    %179 = vmatprep.subr.mxu0 0.0
    %180 = vmatpush1.msra.mxu0 %v142
    %181 = vmatprep.subr.mxu0 0.0
    %182 = vmatpush1.msra.mxu0 %v143
    %183 = vmatprep.subr.mxu0 0.0
    %184 = vmatpush1.msra.mxu0 %v144
    %185 = vmatprep.subr.mxu0 0.0
    %186 = vmatpush1.msra.mxu0 0.0
    %187 = vmatprep.subr.mxu0 0.0
    %188 = vmatpush1.msra.mxu0 0.0
    %189 = vmatprep.subr.mxu0 0.0
    %190 = vmatpush1.msra.mxu0 0.0
    %191 = vmatprep.subr.mxu0 0.0
    %192 = vmatpush1.msra.mxu0 0.0
    %193 = vmatprep.subr.mxu0 0.0
    %194 = vmatpush1.msra.mxu0 0.0
    %195 = vmatprep.subr.mxu0 0.0
    %196 = vmatpush1.msra.mxu0 0.0
    %197 = vmatprep.subr.mxu0 0.0
    %198 = vmatpush1.msra.mxu0 0.0
    %199 = vmatprep.subr.mxu0 0.0
    %200 = vmatpush1.msra.mxu0 0.0
    %201 = vmatprep.subr.mxu0 0.0
    %202 = vmatpush1.msra.mxu0 0.0
    %203 = vmatprep.subr.mxu0 0.0
    %204 = vmatpush1.msra.mxu0 0.0
    %205 = vmatprep.subr.mxu0 0.0
    %206 = vmatpush1.msra.mxu0 0.0
    %207 = vmatprep.subr.mxu0 0.0
    %208 = vmatpush1.msra.mxu0 0.0
    %209 = vmatprep.subr.mxu0 0.0
    %210 = vmatpush1.msra.mxu0 0.0
    %211 = vmatprep.subr.mxu0 0.0
    %212 = vmatpush1.msra.mxu0 0.0
    %213 = vmatprep.subr.mxu0 0.0
    %214 = vmatpush1.msra.mxu0 0.0
    %215 = vmatprep.subr.mxu0 0.0
    %216 = vmatpush1.msra.mxu0 0.0
    %217 = vmatprep.mubr.f32.mxu0 0.0
    %218 = vmatmul.mubr.f32.gmra.mrb[0].mxu0 %v127
    %v219 = vpop.f32.mrb[0].mxu0
    %v220 = vadd.f32 %v151, %v219
    %v221 = vpop.f32.mrb[0].mxu0
    %222 = vdwg.mxu0
    %v223 = vmax.f32 %v220, 0.0
    %s224 = scalar_lea.vmem [#allocation2], 256
    %v225 = vld [vmem:[%s224] sm:$0xff]
    %v226 = vld [vmem:[%s224 + $0x8] sm:$0xff]
    %v227 = vld [vmem:[%s224 + $0x10] sm:$0xff]
    %v228 = vld [vmem:[%s224 + $0x18] sm:$0xff]
    %v229 = vld [vmem:[%s224 + $0x20] sm:$0xff]
    %v230 = vld [vmem:[%s224 + $0x28] sm:$0xff]
    %v231 = vld [vmem:[%s224 + $0x30] sm:$0xff]
    %v232 = vld [vmem:[%s224 + $0x38] sm:$0xff]
    %v233 = vld [vmem:[%s224 + $0x40] sm:$0xff]
    %v234 = vld [vmem:[%s224 + $0x48] sm:$0xff]
    %v235 = vld [vmem:[%s224 + $0x50] sm:$0xff]
    %v236 = vld [vmem:[%s224 + $0x58] sm:$0xff]
    %v237 = vld [vmem:[%s224 + $0x60] sm:$0xff]
    %v238 = vld [vmem:[%s224 + $0x68] sm:$0xff]
    %v239 = vld [vmem:[%s224 + $0x70] sm:$0xff]
    %v240 = vld [vmem:[%s224 + $0x78] sm:$0xff]
    %s241 = scalar_lea.vmem [#allocation5], 2
    %v242 = vld [vmem:[%s241] sm:$0x1]
    %v244 = vlaneseq
    %v245 = vshrl.u32 %v244, 7
    %v246 = vsub.s32 0, %v245
    %v247 = vrot.slane %v242, %v246
    %249 = vmatprep.subr.mxu0 0.0
    %250 = vmatpush1.msra.mxu0 %v225
    %251 = vmatprep.subr.mxu0 0.0
    %252 = vmatpush1.msra.mxu0 %v226
    %253 = vmatprep.subr.mxu0 0.0
    %254 = vmatpush1.msra.mxu0 %v227
    %255 = vmatprep.subr.mxu0 0.0
    %256 = vmatpush1.msra.mxu0 %v228
    %257 = vmatprep.subr.mxu0 0.0
    %258 = vmatpush1.msra.mxu0 %v229
    %259 = vmatprep.subr.mxu0 0.0
    %260 = vmatpush1.msra.mxu0 %v230
    %261 = vmatprep.subr.mxu0 0.0
    %262 = vmatpush1.msra.mxu0 %v231
    %263 = vmatprep.subr.mxu0 0.0
    %264 = vmatpush1.msra.mxu0 %v232
    %265 = vmatprep.subr.mxu0 0.0
    %266 = vmatpush1.msra.mxu0 %v233
    %267 = vmatprep.subr.mxu0 0.0
    %268 = vmatpush1.msra.mxu0 %v234
    %269 = vmatprep.subr.mxu0 0.0
    %270 = vmatpush1.msra.mxu0 %v235
    %271 = vmatprep.subr.mxu0 0.0
    %272 = vmatpush1.msra.mxu0 %v236
    %273 = vmatprep.subr.mxu0 0.0
    %274 = vmatpush1.msra.mxu0 %v237
    %275 = vmatprep.subr.mxu0 0.0
    %276 = vmatpush1.msra.mxu0 %v238
    %277 = vmatprep.subr.mxu0 0.0
    %278 = vmatpush1.msra.mxu0 %v239
    %279 = vmatprep.subr.mxu0 0.0
    %280 = vmatpush1.msra.mxu0 %v240
    %281 = vmatprep.subr.mxu0 0.0
    %282 = vmatpush1.msra.mxu0 0.0
    %283 = vmatprep.subr.mxu0 0.0
    %284 = vmatpush1.msra.mxu0 0.0
    %285 = vmatprep.subr.mxu0 0.0
    %286 = vmatpush1.msra.mxu0 0.0
    %287 = vmatprep.subr.mxu0 0.0
    %288 = vmatpush1.msra.mxu0 0.0
    %289 = vmatprep.subr.mxu0 0.0
    %290 = vmatpush1.msra.mxu0 0.0
    %291 = vmatprep.subr.mxu0 0.0
    %292 = vmatpush1.msra.mxu0 0.0
    %293 = vmatprep.subr.mxu0 0.0
    %294 = vmatpush1.msra.mxu0 0.0
    %295 = vmatprep.subr.mxu0 0.0
    %296 = vmatpush1.msra.mxu0 0.0
    %297 = vmatprep.subr.mxu0 0.0
    %298 = vmatpush1.msra.mxu0 0.0
    %299 = vmatprep.subr.mxu0 0.0
    %300 = vmatpush1.msra.mxu0 0.0
    %301 = vmatprep.subr.mxu0 0.0
    %302 = vmatpush1.msra.mxu0 0.0
    %303 = vmatprep.subr.mxu0 0.0
    %304 = vmatpush1.msra.mxu0 0.0
    %305 = vmatprep.subr.mxu0 0.0
    %306 = vmatpush1.msra.mxu0 0.0
    %307 = vmatprep.subr.mxu0 0.0
    %308 = vmatpush1.msra.mxu0 0.0
    %309 = vmatprep.subr.mxu0 0.0
    %310 = vmatpush1.msra.mxu0 0.0
    %311 = vmatprep.subr.mxu0 0.0
    %312 = vmatpush1.msra.mxu0 0.0
    %313 = vmatprep.mubr.f32.mxu0 0.0
    %314 = vmatmul.mubr.f32.gmra.mrb[0].mxu0 %v223
    %v315 = vpop.f32.mrb[0].mxu0
    %v316 = vadd.f32 %v247, %v315
    %v317 = vpop.f32.mrb[0].mxu0
    %318 = vdwg.mxu0
    %v319 = vmax.f32 %v316, 0.0
    %s320 = scalar_lea.vmem [#allocation2], 384
    %v321 = vld [vmem:[%s320] sm:$0xff]
    %v322 = vld [vmem:[%s320 + $0x8] sm:$0xff]
    %v323 = vld [vmem:[%s320 + $0x10] sm:$0xff]
    %v324 = vld [vmem:[%s320 + $0x18] sm:$0xff]
    %v325 = vld [vmem:[%s320 + $0x20] sm:$0xff]
    %v326 = vld [vmem:[%s320 + $0x28] sm:$0xff]
    %v327 = vld [vmem:[%s320 + $0x30] sm:$0xff]
    %v328 = vld [vmem:[%s320 + $0x38] sm:$0xff]
    %v329 = vld [vmem:[%s320 + $0x40] sm:$0xff]
    %v330 = vld [vmem:[%s320 + $0x48] sm:$0xff]
    %v331 = vld [vmem:[%s320 + $0x50] sm:$0xff]
    %v332 = vld [vmem:[%s320 + $0x58] sm:$0xff]
    %v333 = vld [vmem:[%s320 + $0x60] sm:$0xff]
    %v334 = vld [vmem:[%s320 + $0x68] sm:$0xff]
    %v335 = vld [vmem:[%s320 + $0x70] sm:$0xff]
    %v336 = vld [vmem:[%s320 + $0x78] sm:$0xff]
    %s337 = scalar_lea.vmem [#allocation5], 3
    %v338 = vld [vmem:[%s337] sm:$0x1]
    %v340 = vlaneseq
    %v341 = vshrl.u32 %v340, 7
    %v342 = vsub.s32 0, %v341
    %v343 = vrot.slane %v338, %v342
    %345 = vmatprep.subr.mxu0 0.0
    %346 = vmatpush1.msra.mxu0 %v321
    %347 = vmatprep.subr.mxu0 0.0
    %348 = vmatpush1.msra.mxu0 %v322
    %349 = vmatprep.subr.mxu0 0.0
    %350 = vmatpush1.msra.mxu0 %v323
    %351 = vmatprep.subr.mxu0 0.0
    %352 = vmatpush1.msra.mxu0 %v324
    %353 = vmatprep.subr.mxu0 0.0
    %354 = vmatpush1.msra.mxu0 %v325
    %355 = vmatprep.subr.mxu0 0.0
    %356 = vmatpush1.msra.mxu0 %v326
    %357 = vmatprep.subr.mxu0 0.0
    %358 = vmatpush1.msra.mxu0 %v327
    %359 = vmatprep.subr.mxu0 0.0
    %360 = vmatpush1.msra.mxu0 %v328
    %361 = vmatprep.subr.mxu0 0.0
    %362 = vmatpush1.msra.mxu0 %v329
    %363 = vmatprep.subr.mxu0 0.0
    %364 = vmatpush1.msra.mxu0 %v330
    %365 = vmatprep.subr.mxu0 0.0
    %366 = vmatpush1.msra.mxu0 %v331
    %367 = vmatprep.subr.mxu0 0.0
    %368 = vmatpush1.msra.mxu0 %v332
    %369 = vmatprep.subr.mxu0 0.0
    %370 = vmatpush1.msra.mxu0 %v333
    %371 = vmatprep.subr.mxu0 0.0
    %372 = vmatpush1.msra.mxu0 %v334
    %373 = vmatprep.subr.mxu0 0.0
    %374 = vmatpush1.msra.mxu0 %v335
    %375 = vmatprep.subr.mxu0 0.0
    %376 = vmatpush1.msra.mxu0 %v336
    %377 = vmatprep.subr.mxu0 0.0
    %378 = vmatpush1.msra.mxu0 0.0
    %379 = vmatprep.subr.mxu0 0.0
    %380 = vmatpush1.msra.mxu0 0.0
    %381 = vmatprep.subr.mxu0 0.0
    %382 = vmatpush1.msra.mxu0 0.0
    %383 = vmatprep.subr.mxu0 0.0
    %384 = vmatpush1.msra.mxu0 0.0
    %385 = vmatprep.subr.mxu0 0.0
    %386 = vmatpush1.msra.mxu0 0.0
    %387 = vmatprep.subr.mxu0 0.0
    %388 = vmatpush1.msra.mxu0 0.0
    %389 = vmatprep.subr.mxu0 0.0
    %390 = vmatpush1.msra.mxu0 0.0
    %391 = vmatprep.subr.mxu0 0.0
    %392 = vmatpush1.msra.mxu0 0.0
    %393 = vmatprep.subr.mxu0 0.0
    %394 = vmatpush1.msra.mxu0 0.0
    %395 = vmatprep.subr.mxu0 0.0
    %396 = vmatpush1.msra.mxu0 0.0
    %397 = vmatprep.subr.mxu0 0.0
    %398 = vmatpush1.msra.mxu0 0.0
    %399 = vmatprep.subr.mxu0 0.0
    %400 = vmatpush1.msra.mxu0 0.0
    %401 = vmatprep.subr.mxu0 0.0
    %402 = vmatpush1.msra.mxu0 0.0
    %403 = vmatprep.subr.mxu0 0.0
    %404 = vmatpush1.msra.mxu0 0.0
    %405 = vmatprep.subr.mxu0 0.0
    %406 = vmatpush1.msra.mxu0 0.0
    %407 = vmatprep.subr.mxu0 0.0
    %408 = vmatpush1.msra.mxu0 0.0
    %409 = vmatprep.mubr.f32.mxu0 0.0
    %410 = vmatmul.mubr.f32.gmra.mrb[0].mxu0 %v319
    %v411 = vpop.f32.mrb[0].mxu0
    %v412 = vadd.f32 %v343, %v411
    %v413 = vpop.f32.mrb[0].mxu0
    %414 = vdwg.mxu0
    %vm415 = vcmask 25600
    %416 = vst.msk [vmem:[#allocation7] sm:$0x3] %vm415, %v412
    // Predicated region
    $region22: #{fused_mlp_forward.1} parent=1 // pred_check
      _
    $region23: #{fused_mlp_forward.1} parent=1 // pred_check_branch
      %418 = sbr.rel (0) target = $region25
    $region24: #{fused_mlp_forward.1} parent=1 // pred_region
      %s420 = ssub.s32 32, 32
      %421 = vsyncadd [#allocation4], %s420
      %s423 = sshll.u32 [#allocation7], 4
      %s424 = int_to_ptr.vmem [resolvable:$true] %s423
      %426 = dma.vmem_to_hbm [thread:$0]  %s424, 32, %s3, [#allocation4]
    $region25: #{fused_mlp_forward.1} parent=1 // pred_fallthru
      _
    // Predicated region
    $region26: #{fused_mlp_forward.1} parent=1 // pred_check
      _
    $region27: #{fused_mlp_forward.1} parent=1 // pred_check_branch
      %428 = sbr.rel (0) target = $region29
    $region28: #{fused_mlp_forward.1} parent=1 // pred_region
      %429 = dma.done [#allocation4], 32
    $region29: #{fused_mlp_forward.1} parent=1 // pred_fallthru
      _
    %430 = vsyncpa [#allocation3], 1
    %431 = vsyncpa [#allocation6], 1
    %432 = vsyncpa [#allocation4], 1

</llo_original>
